<compile_context>
chip_gen: v7x
topology: tpu7x:2x2x1
jax: 0.10.0
libtpu: 0.0.40
codegen_flags: <defaults>
</compile_context>

<pallas_src>
import functools

import jax
import jax.numpy as jnp
from jax.experimental import pallas as pl
from jax.experimental.pallas import tpu as pltpu


def _confidence_kernel(sim_ref, out_ref, *, total_rows, block_n):
    i = pl.program_id(0)
    nb = pl.num_programs(0)

    # Stream in native dtype, compute in f32.  Transpose once so rows map to
    # lanes (dense vregs); K maps to sublanes.
    x = sim_ref[...].astype(jnp.float32)                 # (block_n, K)
    xt = jnp.transpose(x)                                # (K, block_n)

    # top-2 values along the class/prototype axis (same values torch.topk
    # returns, including the tie case where the max occurs more than once).
    top1 = jnp.max(xt, axis=0, keepdims=True)            # (1, block_n)
    is_top1 = xt == top1
    n_top1 = jnp.sum(is_top1.astype(jnp.float32), axis=0, keepdims=True)
    runner_up = jnp.max(jnp.where(is_top1, -jnp.inf, xt), axis=0, keepdims=True)
    top2 = jnp.where(n_top1 > 1.0, top1, runner_up)      # (1, block_n)

    confidence = top1 / (top2 + 1e-8)
    val = jnp.exp(1.0 - confidence)                      # (1, block_n) lane-dense

    # Full blocks: plain partial sum (no tail mask needed).
    @pl.when(i != nb - 1)
    def _():
        out_ref[0] = jnp.sum(val, axis=1, keepdims=True)          # (1, 1)

    # Last (possibly ragged) block: mask rows past the end of the array with a
    # select (not a multiply) so undefined tail data can never poison the sum.
    @pl.when(i == nb - 1)
    def _():
        col = jax.lax.broadcasted_iota(jnp.int32, (1, block_n), 1) + i * block_n
        masked = jnp.where(col < total_rows, val, 0.0)
        out_ref[0] = jnp.sum(masked, axis=1, keepdims=True)        # (1, 1)


def confidence_loss(sim_mat, *, block_n=None, vmem_tile_budget_bytes=8 * 2**20):
    """sim_mat: (n, K) float similarities. Returns scalar confidence loss."""
    n, k = sim_mat.shape
    assert k >= 2, "topk(k=2) requires at least 2 entries along dim 1"
    itemsize = jnp.dtype(sim_mat.dtype).itemsize

    # ---- Row-tile sizing ----------------------------------------------------
    # Derive from a per-buffer VMEM budget (Pallas double-buffers the input),
    # cap at 16384 rows, keep >= 2 grid steps when possible (v7x megacore),
    # keep a multiple of 8 (sublane) and never exceed the padded row count.
    if block_n is None:
        block_n = vmem_tile_budget_bytes // (k * itemsize)
    block_n = max(8, int(block_n))
    block_n = min(block_n, 16384)
    if n > 8:
        half = ((pl.cdiv(n, 2) + 7) // 8) * 8
        block_n = min(block_n, half)
    block_n = max(8, (block_n // 8) * 8)
    block_n = min(block_n, pl.cdiv(n, 8) * 8)
    grid = pl.cdiv(n, block_n)

    # Raise the scoped-VMEM limit enough for the double-buffered tile plus the
    # in-kernel f32 copy / transpose temporaries; stay under v7x's 64 MiB.
    tile_bytes = block_n * k * itemsize
    vmem_limit = int(min(max(32 * 2**20, 8 * tile_bytes), 56 * 2**20))

    kernel = functools.partial(_confidence_kernel,
                               total_rows=n, block_n=block_n)

    cost = pl.CostEstimate(
        flops=6 * n * k,                 # maxes / compares / selects per element
        transcendentals=n,               # one exp per row
        bytes_accessed=n * k * itemsize + grid * 4,
    )

    partial_sums = pl.pallas_call(
        kernel,
        out_shape=jax.ShapeDtypeStruct((grid, 1, 1), jnp.float32),
        grid_spec=pltpu.PrefetchScalarGridSpec(
            num_scalar_prefetch=0,
            grid=(grid,),
            in_specs=[pl.BlockSpec((block_n, k), lambda i: (i, 0))],
            out_specs=pl.BlockSpec((1, 1, 1), lambda i: (i, 0, 0))),
        compiler_params=pltpu.CompilerParams(
            dimension_semantics=("parallel",),
            vmem_limit_bytes=vmem_limit),
        cost_estimate=cost,
    )(sim_mat)

    return jnp.sum(partial_sums) / n


def _reference(sim_mat):
    """Pure-JAX reference of the PyTorch forward (for verification)."""
    top2 = jax.lax.top_k(sim_mat.astype(jnp.float32), 2)[0]     # (n, 2)
    conf = top2[..., 0] / (top2[..., 1] + 1e-8)
    return jnp.mean(jnp.exp(1.0 - conf), axis=-1)


if __name__ == "__main__":
    key = jax.random.PRNGKey(0)

    batch, h, w = 2, 16, 16
    num_classes, num_prototype = 4, 8
    n = batch * h * w                       # 512 pixels
    k = num_classes * num_prototype         # 32 class-prototype similarities

    # Sigmoid-squashed scores in (0, 1), like bounded similarity scores.
    sim_mat = jax.nn.sigmoid(jax.random.normal(key, (n, k), dtype=jnp.float32))

    ref = jax.block_until_ready(_reference(sim_mat))

    # Default (budget-derived tile) path; grid >= 2 so both v7x TCs get work.
    out = jax.block_until_ready(confidence_loss(sim_mat))
    assert jnp.allclose(out, ref, rtol=1e-5, atol=1e-6), (out, ref)

    # Multi-block path (grid > 1) — small tile used only to exercise the grid.
    out_mb = jax.block_until_ready(confidence_loss(sim_mat, block_n=128))
    assert jnp.allclose(out_mb, ref, rtol=1e-5, atol=1e-6), (out_mb, ref)

    # Ragged tail: last block partially out of range, masked inside the kernel
    # (and only in the last grid step, thanks to the pl.when gate).
    sim_ragged = sim_mat[:500]
    ref_r = jax.block_until_ready(_reference(sim_ragged))
    out_r = jax.block_until_ready(confidence_loss(sim_ragged, block_n=128))
    assert jnp.allclose(out_r, ref_r, rtol=1e-5, atol=1e-6), (out_r, ref_r)

    # bf16 streaming path: halves HBM bytes; top-2 selection is exact in bf16,
    # divide/exp still run in f32 inside the kernel.
    sim_bf16 = sim_mat.astype(jnp.bfloat16)
    ref_b = jax.block_until_ready(_reference(sim_bf16))
    out_b = jax.block_until_ready(confidence_loss(sim_bf16))
    assert jnp.allclose(out_b, ref_b, rtol=1e-4, atol=1e-5), (out_b, ref_b)

    print("KERNEL_OK")
</pallas_src>

<mosaic_0001>
module attributes {stable_mosaic.version = 11 : i64} {
  func.func @_confidence_kernel(%arg0: i32, %arg1: memref<256x32xf32, #tpu.memory_space<vmem>>, %arg2: memref<1x1x1xf32, #tpu.memory_space<vmem>>) attributes {dimension_semantics = [#tpu.dimension_semantics<parallel>], iteration_bounds = array<i64: 2>, scalar_prefetch = 0 : i64, scratch_operands = 0 : i64, tpu.core_type = #tpu.core_type<tc>, window_params = [{transform_indices = @transform_0, window_bounds = array<i64: 256, 32>}, {transform_indices = @transform_1, window_bounds = array<i64: 1, 1, 1>}]} {
    %c0 = arith.constant 0 : index
    %c0_0 = arith.constant 0 : index
    %0 = vector.load %arg1[%c0, %c0_0] : memref<256x32xf32, #tpu.memory_space<vmem>>, vector<256x32xf32>
    %1 = tpu.transpose %0, [1, 0] : vector<256x32xf32> -> vector<32x256xf32>
    %cst = arith.constant dense<0xFF800000> : vector<256xf32>
    %2 = vector.multi_reduction <maximumf>, %1, %cst [0] : vector<32x256xf32> to vector<256xf32>
    %3 = vector.shape_cast %2 : vector<256xf32> to vector<1x256xf32>
    %4 = vector.broadcast %3 : vector<1x256xf32> to vector<32x256xf32>
    %5 = arith.cmpf oeq, %1, %4 : vector<32x256xf32>
    %6 = arith.extui %5 : vector<32x256xi1> to vector<32x256xi32>
    %7 = arith.sitofp %6 : vector<32x256xi32> to vector<32x256xf32>
    %cst_1 = arith.constant dense<0.000000e+00> : vector<256xf32>
    %8 = vector.multi_reduction <add>, %7, %cst_1 [0] : vector<32x256xf32> to vector<256xf32>
    %9 = vector.shape_cast %8 : vector<256xf32> to vector<1x256xf32>
    %cst_2 = arith.constant 0xFF800000 : f32
    %10 = vector.broadcast %cst_2 : f32 to vector<32x256xf32>
    %11 = arith.select %5, %10, %1 : vector<32x256xi1>, vector<32x256xf32>
    %cst_3 = arith.constant dense<0xFF800000> : vector<256xf32>
    %12 = vector.multi_reduction <maximumf>, %11, %cst_3 [0] : vector<32x256xf32> to vector<256xf32>
    %13 = vector.shape_cast %12 : vector<256xf32> to vector<1x256xf32>
    %cst_4 = arith.constant 1.000000e+00 : f32
    %14 = vector.broadcast %cst_4 : f32 to vector<1x256xf32>
    %15 = arith.cmpf ogt, %9, %14 : vector<1x256xf32>
    %16 = arith.select %15, %3, %13 : vector<1x256xi1>, vector<1x256xf32>
    %cst_5 = arith.constant 9.99999993E-9 : f32
    %17 = vector.broadcast %cst_5 : f32 to vector<1x256xf32>
    %18 = arith.addf %16, %17 : vector<1x256xf32>
    %19 = arith.divf %3, %18 : vector<1x256xf32>
    %cst_6 = arith.constant 1.000000e+00 : f32
    %20 = vector.broadcast %cst_6 : f32 to vector<1x256xf32>
    %21 = arith.subf %20, %19 : vector<1x256xf32>
    %22 = math.exp %21 : vector<1x256xf32>
    %c1_i32 = arith.constant 1 : i32
    %23 = arith.cmpi ne, %arg0, %c1_i32 : i32
    %24 = arith.extui %23 : i1 to i32
    %c0_i32 = arith.constant 0 : i32
    %25 = arith.cmpi ne, %24, %c0_i32 : i32
    scf.if %25 {
      %cst_9 = arith.constant dense<0.000000e+00> : vector<1xf32>
      %29 = vector.multi_reduction <add>, %22, %cst_9 [1] : vector<1x256xf32> to vector<1xf32>
      %30 = vector.shape_cast %29 : vector<1xf32> to vector<1x1xf32>
      %c0_10 = arith.constant 0 : index
      %c0_11 = arith.constant 0 : index
      %c0_12 = arith.constant 0 : index
      %31 = vector.load %arg2[%c0_10, %c0_11, %c0_12] : memref<1x1x1xf32, #tpu.memory_space<vmem>>, vector<1x1x1xf32>
      %32 = vector.shape_cast %31 : vector<1x1x1xf32> to vector<1x1xf32>
      %33 = vector.shape_cast %30 : vector<1x1xf32> to vector<1x1x1xf32>
      tpu.vector_store %arg2[%c0_10, %c0_11, %c0_12], %33 {strides = array<i32>} : memref<1x1x1xf32, #tpu.memory_space<vmem>>, vector<1x1x1xf32>,
    } else {
    }
    %c1_i32_7 = arith.constant 1 : i32
    %26 = arith.cmpi eq, %arg0, %c1_i32_7 : i32
    %27 = arith.extui %26 : i1 to i32
    %c0_i32_8 = arith.constant 0 : i32
    %28 = arith.cmpi ne, %27, %c0_i32_8 : i32
    scf.if %28 {
      %29 = tpu.iota {dimensions = array<i32: 1>} : vector<1x256xi32>
      %c256_i32 = arith.constant 256 : i32
      %30 = arith.muli %arg0, %c256_i32 : i32
      %31 = vector.broadcast %30 : i32 to vector<1x256xi32>
      %32 = arith.addi %29, %31 : vector<1x256xi32>
      %c512_i32 = arith.constant 512 : i32
      %33 = vector.broadcast %c512_i32 : i32 to vector<1x256xi32>
      %34 = arith.cmpi slt, %32, %33 : vector<1x256xi32>
      %cst_9 = arith.constant 0.000000e+00 : f32
      %35 = vector.broadcast %cst_9 : f32 to vector<1x256xf32>
      %36 = arith.select %34, %22, %35 : vector<1x256xi1>, vector<1x256xf32>
      %cst_10 = arith.constant dense<0.000000e+00> : vector<1xf32>
      %37 = vector.multi_reduction <add>, %36, %cst_10 [1] : vector<1x256xf32> to vector<1xf32>
      %38 = vector.shape_cast %37 : vector<1xf32> to vector<1x1xf32>
      %c0_11 = arith.constant 0 : index
      %c0_12 = arith.constant 0 : index
      %c0_13 = arith.constant 0 : index
      %39 = vector.load %arg2[%c0_11, %c0_12, %c0_13] : memref<1x1x1xf32, #tpu.memory_space<vmem>>, vector<1x1x1xf32>
      %40 = vector.shape_cast %39 : vector<1x1x1xf32> to vector<1x1xf32>
      %41 = vector.shape_cast %38 : vector<1x1xf32> to vector<1x1x1xf32>
      tpu.vector_store %arg2[%c0_11, %c0_12, %c0_13], %41 {strides = array<i32>} : memref<1x1x1xf32, #tpu.memory_space<vmem>>, vector<1x1x1xf32>,
    } else {
    }
    return
  }
  func.func @transform_0(%arg0: i32) -> (i32, i32) {
    %c0_i32 = arith.constant 0 : i32
    %c0_i32_0 = arith.constant 0 : i32
    return %arg0, %c0_i32 : i32, i32
  }
  func.func @transform_1(%arg0: i32) -> (i32, i32, i32) {
    %c0_i32 = arith.constant 0 : i32
    %c0_i32_0 = arith.constant 0 : i32
    %c0_i32_1 = arith.constant 0 : i32
    return %arg0, %c0_i32, %c0_i32_0 : i32, i32, i32
  }
}

</mosaic_0001>

<llo_original>
// kernel: tpu_custom_call.1
$region0: #{tpu_custom_call.1}
  #allocation0 [shape = 'u32[]', space=smem, size = 0x4, offset = 0x4, fixed_abs, tag = 'smem constant byte address 0x4 - core index']
  #allocation1 [shape = 'u32[144,128]{1,0:T(1,128)}', space=vmem, size = 0x12000, scoped, tag = 'internal scratch']
  %s0 = inlined_call_operand.vmem [shape: f32[512,32], index: 0, kind: input, shape index: {}]
  %s1 = inlined_call_operand.vmem [shape: f32[2,1,1], index: 1, kind: output, shape index: {}]
  %s2 = sld [smem:[#allocation0]]
  $region45: #{tpu_custom_call.1} parent=0
    _
  %s4 = ssub.s32 1, %s2
  %s5 = scalar_select 0, %s4, %s2
  loop: start=0, step=1, limit=4
  $region2: #{tpu_custom_call.1} parent=0 // loop_pre_header
    _
  $region3: #{tpu_custom_call.1} parent=0 // loop_header
    %s7 = sphi 0, %s11
    %p8 = scmp.ge.s32.totalorder %s7, 4
    %s17 = sphi 0, %s19
    %s20 = sphi 0, %s17
    %s21 = sphi 0, %s20
    %s37 = sphi 0, %s21
    %s43 = sphi 0, %s45
    %s46 = sphi 0, %s43
    %s47 = sphi 0, %s46
    %s63 = sphi 0, %s47
  $region4: #{tpu_custom_call.1} parent=0 // loop_header_branch
    %10 = sbr.rel (%p8) target = $region8
  $region5: #{tpu_custom_call.1} parent=0 // loop_body
    %s12 = ssub.s32 %s7, 1
    %s13 = ssub.s32 %s7, 2
    %s14 = sadd.s32 %s7, 1
    %s15 = ssub.s32 %s7, %s14
    %p16 = scmp.eq.s32.totalorder %s15, 0
    %s18 = sadd.s32 %s17, 1
    %s19 = scalar_select %p16, %s17, %s18
    %p22 = pneg %p16
    %p23 = scmp.eq.s32.totalorder %s7, 1
    %p24 = por %p22, %p23
    %p25 = scmp.ne.s32.totalorder %s17, %s20
    %p26 = scmp.eq.s32.totalorder %s7, 0
    %p27 = por %p25, %p26
    %p28 = scmp.ne.s32.totalorder %s17, %s20
    %p29 = scmp.eq.s32.totalorder %s12, 1
    %p30 = por %p28, %p29
    %p31 = scmp.ne.s32.totalorder %s20, %s21
    %p32 = scmp.eq.s32.totalorder %s12, 0
    %p33 = por %p31, %p32
    %p34 = scmp.ne.s32.totalorder %s20, %s21
    %p35 = scmp.eq.s32.totalorder %s13, 1
    %p36 = por %p34, %p35
    %p38 = scmp.ne.s32.totalorder %s21, %s37
    %p39 = scmp.eq.s32.totalorder %s13, 0
    %p40 = por %p38, %p39
    %s41 = ssub.s32 %s7, %s14
    %p42 = scmp.eq.s32.totalorder %s41, 0
    %s44 = sadd.s32 %s43, 1
    %s45 = scalar_select %p42, %s43, %s44
    %p48 = pneg %p42
    %p49 = scmp.eq.s32.totalorder %s7, 1
    %p50 = por %p48, %p49
    %p51 = scmp.ne.s32.totalorder %s43, %s46
    %p52 = scmp.eq.s32.totalorder %s7, 0
    %p53 = por %p51, %p52
    %p54 = scmp.ne.s32.totalorder %s43, %s46
    %p55 = scmp.eq.s32.totalorder %s12, 1
    %p56 = por %p54, %p55
    %p57 = scmp.ne.s32.totalorder %s46, %s47
    %p58 = scmp.eq.s32.totalorder %s12, 0
    %p59 = por %p57, %p58
    %p60 = scmp.ne.s32.totalorder %s46, %s47
    %p61 = scmp.eq.s32.totalorder %s13, 1
    %p62 = por %p60, %p61
    %p64 = scmp.ne.s32.totalorder %s47, %s63
    %p65 = scmp.eq.s32.totalorder %s13, 0
    %p66 = por %p64, %p65
    %p67 = scmp.le.s32.totalorder 1, %s7
    %p68 = scmp.lt.s32.totalorder %s7, 3
    %p69 = pnand %p67, %p68
    %p70 = pneg %p69
    // Predicated region
    $region9: #{tpu_custom_call.1} parent=5 // pred_check
      _
    $region10: #{tpu_custom_call.1} parent=5 // pred_check_branch
      %72 = sbr.rel (%p69) target = $region12
    $region11: #{tpu_custom_call.1} parent=5 // pred_region
      %s73 = ssub.s32 %s7, 1
    $region12: #{tpu_custom_call.1} parent=5 // pred_fallthru
      _
    %p74 = scmp.lt.s32.totalorder %s7, 2
    // Predicated region
    $region13: #{tpu_custom_call.1} parent=5 // pred_check
      %p75 = pneg %p74
    $region14: #{tpu_custom_call.1} parent=5 // pred_check_branch
      %77 = sbr.rel (%p75) target = $region16
    $region15: #{tpu_custom_call.1} parent=5 // pred_region
      // Predicated region
      $region17: #{tpu_custom_call.1} parent=15 // pred_check
        %p78 = pneg %p27
      $region18: #{tpu_custom_call.1} parent=15 // pred_check_branch
        %80 = sbr.rel (%p78) target = $region20
      $region19: #{tpu_custom_call.1} parent=15 // pred_region
        %s81 = smul.u32 32, %s7
        %p82 = scmp.lt.s32.totalorder %s81, 63
        %s83 = scalar_select %p82, %s81, 63
        %s84 = smul.addr %s83, 8
        %s85 = scalar_lea.vmem %s0, %s84
        %s86 = smul.u32 32, %s7
      $region20: #{tpu_custom_call.1} parent=15 // pred_fallthru
        _
    $region16: #{tpu_custom_call.1} parent=5 // pred_fallthru
      _
    %p87 = scmp.le.s32.totalorder 1, %s7
    %p88 = scmp.lt.s32.totalorder %s7, 3
    %p89 = pnand %p87, %p88
    %p90 = pneg %p89
    // Predicated region
    $region21: #{tpu_custom_call.1} parent=5 // pred_check
      _
    $region22: #{tpu_custom_call.1} parent=5 // pred_check_branch
      %92 = sbr.rel (%p89) target = $region24
    $region23: #{tpu_custom_call.1} parent=5 // pred_region
      %s93 = ssub.s32 %s7, 1
      %s94 = smul.u32 32, %s12
      %p95 = scmp.lt.s32.totalorder %s94, 63
      %s96 = scalar_select %p95, %s94, 63
      %s97 = smul.addr %s96, 8
      %s98 = scalar_lea.vmem %s0, %s97
      %p99 = pneg %p33
      %p100 = pneg %p30
      %p101 = pneg %p59
      %p102 = pneg %p56
      %p103 = scmp.lt.s32.totalorder %s12, 1
      %s104 = scalar_select %p103, %s12, 1
      %s105 = scalar_lea.vmem %s1, %s104
      %s106 = smul.u32 32, %s12
      %p107 = scmp.lt.s32.totalorder %s106, 63
      %s108 = scalar_select %p107, %s106, 63
      %s109 = smul.addr %s108, 8
      %s110 = scalar_lea.vmem %s0, %s109
      %s111 = smul.u32 32, %s12
      %p112 = scmp.lt.s32.totalorder %s12, 1
      %s113 = scalar_select %p112, %s12, 1
      %s114 = scalar_lea.vmem %s1, %s113
      %v115 = vld [vmem:[%s110] sm:$0xff]
      %v116 = vld [vmem:[%s110 + $0x8] sm:$0xff]
      %v117 = vld [vmem:[%s110 + $0x10] sm:$0xff]
      %v118 = vld [vmem:[%s110 + $0x18] sm:$0xff]
      %v119 = vld [vmem:[%s110 + $0x20] sm:$0xff]
      %v120 = vld [vmem:[%s110 + $0x28] sm:$0xff]
      %v121 = vld [vmem:[%s110 + $0x30] sm:$0xff]
      %v122 = vld [vmem:[%s110 + $0x38] sm:$0xff]
      %v123 = vld [vmem:[%s110 + $0x40] sm:$0xff]
      %v124 = vld [vmem:[%s110 + $0x48] sm:$0xff]
      %v125 = vld [vmem:[%s110 + $0x50] sm:$0xff]
      %v126 = vld [vmem:[%s110 + $0x58] sm:$0xff]
      %v127 = vld [vmem:[%s110 + $0x60] sm:$0xff]
      %v128 = vld [vmem:[%s110 + $0x68] sm:$0xff]
      %v129 = vld [vmem:[%s110 + $0x70] sm:$0xff]
      %v130 = vld [vmem:[%s110 + $0x78] sm:$0xff]
      %v131 = vld [vmem:[%s110 + $0x80] sm:$0xff]
      %v132 = vld [vmem:[%s110 + $0x88] sm:$0xff]
      %v133 = vld [vmem:[%s110 + $0x90] sm:$0xff]
      %v134 = vld [vmem:[%s110 + $0x98] sm:$0xff]
      %v135 = vld [vmem:[%s110 + $0xa0] sm:$0xff]
      %v136 = vld [vmem:[%s110 + $0xa8] sm:$0xff]
      %v137 = vld [vmem:[%s110 + $0xb0] sm:$0xff]
      %v138 = vld [vmem:[%s110 + $0xb8] sm:$0xff]
      %v139 = vld [vmem:[%s110 + $0xc0] sm:$0xff]
      %v140 = vld [vmem:[%s110 + $0xc8] sm:$0xff]
      %v141 = vld [vmem:[%s110 + $0xd0] sm:$0xff]
      %v142 = vld [vmem:[%s110 + $0xd8] sm:$0xff]
      %v143 = vld [vmem:[%s110 + $0xe0] sm:$0xff]
      %v144 = vld [vmem:[%s110 + $0xe8] sm:$0xff]
      %v145 = vld [vmem:[%s110 + $0xf0] sm:$0xff]
      %v146 = vld [vmem:[%s110 + $0xf8] sm:$0xff]
      %147 = vxpose.xlu0.b32.start [1/16] %v115, 128
      %148 = vxpose.xlu0.b32.cont [2/16] %v116, 128
      %149 = vxpose.xlu0.b32.cont [3/16] %v117, 128
      %150 = vxpose.xlu0.b32.cont [4/16] %v118, 128
      %151 = vxpose.xlu0.b32.cont [5/16] %v119, 128
      %152 = vxpose.xlu0.b32.cont [6/16] %v120, 128
      %153 = vxpose.xlu0.b32.cont [7/16] %v121, 128
      %154 = vxpose.xlu0.b32.cont [8/16] %v122, 128
      %155 = vxpose.xlu0.b32.cont [9/16] %v123, 128
      %156 = vxpose.xlu0.b32.cont [10/16] %v124, 128
      %157 = vxpose.xlu0.b32.cont [11/16] %v125, 128
      %158 = vxpose.xlu0.b32.cont [12/16] %v126, 128
      %159 = vxpose.xlu0.b32.cont [13/16] %v127, 128
      %160 = vxpose.xlu0.b32.cont [14/16] %v128, 128
      %161 = vxpose.xlu0.b32.cont [15/16] %v129, 128
      %162 = vxpose.xlu0.b32.end [16/16] %v130, 128
      %v163 = vpop.trf.xlu0
      %v164 = vpop.trf.xlu0
      %v165 = vpop.trf.xlu0
      %v166 = vpop.trf.xlu0
      %v167 = vpop.trf.xlu0
      %v168 = vpop.trf.xlu0
      %v169 = vpop.trf.xlu0
      %v170 = vpop.trf.xlu0
      %v171 = vpop.trf.xlu0
      %v172 = vpop.trf.xlu0
      %v173 = vpop.trf.xlu0
      %v174 = vpop.trf.xlu0
      %v175 = vpop.trf.xlu0
      %v176 = vpop.trf.xlu0
      %v177 = vpop.trf.xlu0
      %v178 = vpop.trf.xlu0
      %179 = vxpose.xlu0.b32.start [1/16] %v131, 128
      %180 = vxpose.xlu0.b32.cont [2/16] %v132, 128
      %181 = vxpose.xlu0.b32.cont [3/16] %v133, 128
      %182 = vxpose.xlu0.b32.cont [4/16] %v134, 128
      %183 = vxpose.xlu0.b32.cont [5/16] %v135, 128
      %184 = vxpose.xlu0.b32.cont [6/16] %v136, 128
      %185 = vxpose.xlu0.b32.cont [7/16] %v137, 128
      %186 = vxpose.xlu0.b32.cont [8/16] %v138, 128
      %187 = vxpose.xlu0.b32.cont [9/16] %v139, 128
      %188 = vxpose.xlu0.b32.cont [10/16] %v140, 128
      %189 = vxpose.xlu0.b32.cont [11/16] %v141, 128
      %190 = vxpose.xlu0.b32.cont [12/16] %v142, 128
      %191 = vxpose.xlu0.b32.cont [13/16] %v143, 128
      %192 = vxpose.xlu0.b32.cont [14/16] %v144, 128
      %193 = vxpose.xlu0.b32.cont [15/16] %v145, 128
      %194 = vxpose.xlu0.b32.end [16/16] %v146, 128
      %v195 = vpop.trf.xlu0
      %v196 = vpop.trf.xlu0
      %v197 = vpop.trf.xlu0
      %v198 = vpop.trf.xlu0
      %v199 = vpop.trf.xlu0
      %v200 = vpop.trf.xlu0
      %v201 = vpop.trf.xlu0
      %v202 = vpop.trf.xlu0
      %v203 = vpop.trf.xlu0
      %v204 = vpop.trf.xlu0
      %v205 = vpop.trf.xlu0
      %v206 = vpop.trf.xlu0
      %v207 = vpop.trf.xlu0
      %v208 = vpop.trf.xlu0
      %v209 = vpop.trf.xlu0
      %v210 = vpop.trf.xlu0
      %v211 = vmax.f32 %v163, %v165
      %v212 = vmax.f32 %v164, %v166
      %v213 = vmax.f32 %v211, %v212
      %v214 = vrot.slane %v213, 4
      %v215 = vmax.f32 %v213, %v214
      %v216 = vrot.slane %v215, 2
      %v217 = vmax.f32 %v215, %v216
      %v218 = vrot.slane %v217, 1
      %v219 = vmax.f32 %v217, %v218
      %v220 = vmax.f32 %v195, %v197
      %v221 = vmax.f32 %v196, %v198
      %v222 = vmax.f32 %v220, %v221
      %v223 = vrot.slane %v222, 4
      %v224 = vmax.f32 %v222, %v223
      %v225 = vrot.slane %v224, 2
      %v226 = vmax.f32 %v224, %v225
      %v227 = vrot.slane %v226, 1
      %v228 = vmax.f32 %v226, %v227
      %vm229 = vcmp.eq.f32.partialorder %v163, %v219
      %vm230 = vcmp.eq.f32.partialorder %v195, %v228
      %vm231 = vcmp.eq.f32.partialorder %v164, %v219
      %vm232 = vcmp.eq.f32.partialorder %v196, %v228
      %vm233 = vcmp.eq.f32.partialorder %v165, %v219
      %vm234 = vcmp.eq.f32.partialorder %v197, %v228
      %vm235 = vcmp.eq.f32.partialorder %v166, %v219
      %vm236 = vcmp.eq.f32.partialorder %v198, %v228
      %v237 = vsel %vm229, 1, 0
      %v238 = vsel %vm230, 1, 0
      %v239 = vsel %vm231, 1, 0
      %v240 = vsel %vm232, 1, 0
      %v241 = vsel %vm233, 1, 0
      %v242 = vsel %vm234, 1, 0
      %v243 = vsel %vm235, 1, 0
      %v244 = vsel %vm236, 1, 0
      %v245 = vcvt.s32.f32 %v237
      %v246 = vcvt.s32.f32 %v238
      %v247 = vcvt.s32.f32 %v239
      %v248 = vcvt.s32.f32 %v240
      %v249 = vcvt.s32.f32 %v241
      %v250 = vcvt.s32.f32 %v242
      %v251 = vcvt.s32.f32 %v243
      %v252 = vcvt.s32.f32 %v244
      %v253 = vadd.f32 %v245, %v247
      %v254 = vadd.f32 %v253, %v249
      %v255 = vadd.f32 %v254, %v251
      %v256 = vrot.slane %v255, 4
      %v257 = vadd.f32 %v255, %v256
      %v258 = vrot.slane %v257, 2
      %v259 = vadd.f32 %v257, %v258
      %v260 = vrot.slane %v259, 1
      %v261 = vadd.f32 %v259, %v260
      %v262 = vadd.f32 %v246, %v248
      %v263 = vadd.f32 %v262, %v250
      %v264 = vadd.f32 %v263, %v252
      %v265 = vrot.slane %v264, 4
      %v266 = vadd.f32 %v264, %v265
      %v267 = vrot.slane %v266, 2
      %v268 = vadd.f32 %v266, %v267
      %v269 = vrot.slane %v268, 1
      %v270 = vadd.f32 %v268, %v269
      %v271 = vsel %vm229, -inf, %v163
      %v272 = vsel %vm230, -inf, %v195
      %v273 = vsel %vm231, -inf, %v164
      %v274 = vsel %vm232, -inf, %v196
      %v275 = vsel %vm233, -inf, %v165
      %v276 = vsel %vm234, -inf, %v197
      %v277 = vsel %vm235, -inf, %v166
      %v278 = vsel %vm236, -inf, %v198
      %v279 = vmax.f32 %v271, %v275
      %v280 = vmax.f32 %v273, %v277
      %v281 = vmax.f32 %v279, %v280
      %v282 = vrot.slane %v281, 4
      %v283 = vmax.f32 %v281, %v282
      %v284 = vrot.slane %v283, 2
      %v285 = vmax.f32 %v283, %v284
      %v286 = vrot.slane %v285, 1
      %v287 = vmax.f32 %v285, %v286
      %v288 = vmax.f32 %v272, %v276
      %v289 = vmax.f32 %v274, %v278
      %v290 = vmax.f32 %v288, %v289
      %v291 = vrot.slane %v290, 4
      %v292 = vmax.f32 %v290, %v291
      %v293 = vrot.slane %v292, 2
      %v294 = vmax.f32 %v292, %v293
      %v295 = vrot.slane %v294, 1
      %v296 = vmax.f32 %v294, %v295
      %vm297 = vcmp.gt.f32.partialorder %v261, 1.0
      %vm298 = vcmp.gt.f32.partialorder %v270, 1.0
      %v299 = vsel %vm297, %v219, %v287
      %v300 = vsel %vm298, %v228, %v296
      %v301 = vadd.f32 %v299, 1e-08
      %v302 = vadd.f32 %v300, 1e-08
      %v303 = vrcp.pop %v301
      %v304 = vmul.f32 %v219, %v303
      %v305 = vrcp.pop %v302
      %v306 = vmul.f32 %v228, %v305
      %v307 = vsub.f32 1.0, %v304
      %v308 = vsub.f32 1.0, %v306
      %v309 = vmul.f32 %v307, 1.442695
      %v310 = vpow.pop %v309
      %v311 = vmul.f32 %v308, 1.442695
      %v312 = vpow.pop %v311
      %p313 = scmp.ne.s32.totalorder %s12, 1
      // Predicated region
      $region25: #{tpu_custom_call.1} parent=23 // pred_check
        %p314 = pneg %p313
      $region26: #{tpu_custom_call.1} parent=23 // pred_check_branch
        %316 = sbr.rel (%p314) target = $region28
      $region27: #{tpu_custom_call.1} parent=23 // pred_region
        %v317 = vadd.f32 %v310, %v312
        %318 = vadd.xlane.f32.xlu0 %v317
        %v319 = vpop.xlane.xlu0 %318
        %vm320 = vcmask 0
        %321 = vst.msk [vmem:[%s114] sm:$0x1] %vm320, %v319
      $region28: #{tpu_custom_call.1} parent=23 // pred_fallthru
        _
      %p322 = scmp.eq.s32.totalorder %s12, 1
      // Predicated region
      $region29: #{tpu_custom_call.1} parent=23 // pred_check
        %p323 = pneg %p322
      $region30: #{tpu_custom_call.1} parent=23 // pred_check_branch
        %325 = sbr.rel (%p323) target = $region32
      $region31: #{tpu_custom_call.1} parent=23 // pred_region
        %v326 = vlaneseq
        %v327 = vand.u32 %v326, 127
        %v328 = vadd.s32 %v327, 128
        %s329 = smul.u32 %s12, 256
        %v330 = vstv %s329
        %v331 = vadd.s32 %v327, %v330
        %v332 = vadd.s32 %v328, %v330
        %vm333 = vcmp.lt.s32.totalorder %v331, 512
        %vm334 = vcmp.lt.s32.totalorder %v332, 512
        %v335 = vsel %vm333, %v310, 0.0
        %v336 = vsel %vm334, %v312, 0.0
        %v337 = vadd.f32 %v335, %v336
        %338 = vadd.xlane.f32.xlu0 %v337
        %v339 = vpop.xlane.xlu0 %338
        %vm340 = vcmask 0
        %341 = vst.msk [vmem:[%s114] sm:$0x1] %vm340, %v339
      $region32: #{tpu_custom_call.1} parent=23 // pred_fallthru
        _
      %p342 = scmp.lt.s32.totalorder %s12, 1
      %s343 = scalar_select %p342, %s12, 1
      %s344 = scalar_lea.vmem %s1, %s343
      // Predicated region
      $region33: #{tpu_custom_call.1} parent=23 // pred_check
        %p345 = pneg %p56
      $region34: #{tpu_custom_call.1} parent=23 // pred_check_branch
        %347 = sbr.rel (%p345) target = $region36
      $region35: #{tpu_custom_call.1} parent=23 // pred_region
        _
      $region36: #{tpu_custom_call.1} parent=23 // pred_fallthru
        _
    $region24: #{tpu_custom_call.1} parent=5 // pred_fallthru
      _
    %p348 = scmp.le.s32.totalorder 2, %s7
    // Predicated region
    $region37: #{tpu_custom_call.1} parent=5 // pred_check
      %p349 = pneg %p348
    $region38: #{tpu_custom_call.1} parent=5 // pred_check_branch
      %351 = sbr.rel (%p349) target = $region40
    $region39: #{tpu_custom_call.1} parent=5 // pred_region
      %s352 = ssub.s32 %s7, 2
      // Predicated region
      $region41: #{tpu_custom_call.1} parent=39 // pred_check
        %p353 = pneg %p62
      $region42: #{tpu_custom_call.1} parent=39 // pred_check_branch
        %355 = sbr.rel (%p353) target = $region44
      $region43: #{tpu_custom_call.1} parent=39 // pred_region
        %p356 = scmp.lt.s32.totalorder %s13, 1
        %s357 = scalar_select %p356, %s13, 1
        %s358 = scalar_lea.vmem %s1, %s357
      $region44: #{tpu_custom_call.1} parent=39 // pred_fallthru
        _
    $region40: #{tpu_custom_call.1} parent=5 // pred_fallthru
      _
  $region6: #{tpu_custom_call.1} parent=0 // loop_footer
    %s11 = sadd.s32 1, %s7
  $region7: #{tpu_custom_call.1} parent=0 // loop_footer_branch
    %6 = sbr.rel target = $region3
  $region8: #{tpu_custom_call.1} parent=0 // loop_exit
    _

</llo_original>
